<compile_context>
chip_gen: v5e
topology: v5e:2x2
jax: 0.10.0
libtpu: 0.0.40
codegen_flags: <defaults>
</compile_context>

<pallas_src>
import jax
import jax.numpy as jnp
from jax.experimental import pallas as pl
from jax.experimental.pallas import tpu as pltpu

INPUT_DIM = 28 * 28
HIDDEN_DIM1 = 128
HIDDEN_DIM2 = 128
OUTPUT_DIM = 10
OUT_PAD = 128  # lane-dense padded output width


def _round_up(n, m):
    return ((n + m - 1) // m) * m


def mlp_kernel(x_ref, w1_ref, b1_ref, w2_ref, b2_ref, w3_ref, b3_ref,
               o_ref, h1_ref, h2_ref):
    # fc1 + relu  (bf16 inputs/weights, f32 accumulate, f32 bias)
    h1_ref[...] = jnp.maximum(
        jnp.dot(x_ref[...], w1_ref[...], preferred_element_type=jnp.float32)
        + b1_ref[...], 0.0)
    # fc2 + relu
    h2_ref[...] = jnp.maximum(
        jnp.dot(h1_ref[...].astype(w2_ref.dtype), w2_ref[...],
                preferred_element_type=jnp.float32) + b2_ref[...], 0.0)
    # fc3 + relu (output padded to 128 lanes -> unmasked stores)
    o_ref[...] = jnp.maximum(
        jnp.dot(h2_ref[...].astype(w3_ref.dtype), w3_ref[...],
                preferred_element_type=jnp.float32) + b3_ref[...],
        0.0).astype(o_ref.dtype)


def mlp_forward(x, params, *, bm=None):
    """x: (B, INPUT_DIM) float32. Returns (B, OUTPUT_DIM) float32."""
    w1, b1, w2, b2, w3, b3 = params
    B = x.shape[0]

    # Batch tile: large enough to amortize per-step pipeline overhead and fill
    # MXU rows, capped at 256 so the grid keeps >= 2 steps for any B (2 TCs on
    # v7x).  Always a multiple of 8 (sublane granularity).
    if bm is None:
        bm = min(256, max(8, _round_up(pl.cdiv(B, 2), 8)))
    bm = _round_up(bm, 8)
    Bp = _round_up(B, bm)
    if Bp != B:
        x = jnp.pad(x, ((0, Bp - B), (0, 0)))
    grid = (Bp // bm,)

    # Lane-dense output: pad the 10-wide head to 128 columns (zeros).
    w3p = jnp.pad(w3, ((0, 0), (0, OUT_PAD - w3.shape[1])))
    b3p = jnp.pad(b3, ((0, 0), (0, OUT_PAD - b3.shape[1])))

    # bf16 activations/weights (halve HBM traffic); f32 biases + accumulation.
    xb = x.astype(jnp.bfloat16)
    w1b = w1.astype(jnp.bfloat16)
    w2b = w2.astype(jnp.bfloat16)
    w3b = w3p.astype(jnp.bfloat16)

    def resident(arr):  # same block every grid step -> stays VMEM-resident
        return pl.BlockSpec(arr.shape, lambda i: (0, 0))

    out_padded = pl.pallas_call(
        mlp_kernel,
        out_shape=jax.ShapeDtypeStruct((Bp, OUT_PAD), jnp.float32),
        grid_spec=pltpu.PrefetchScalarGridSpec(
            num_scalar_prefetch=0,
            grid=grid,
            in_specs=[
                pl.BlockSpec((bm, INPUT_DIM), lambda i: (i, 0)),  # x tile
                resident(w1b), resident(b1),
                resident(w2b), resident(b2),
                resident(w3b), resident(b3p),
            ],
            out_specs=pl.BlockSpec((bm, OUT_PAD), lambda i: (i, 0)),
            scratch_shapes=[
                pltpu.VMEM((bm, HIDDEN_DIM1), jnp.float32),
                pltpu.VMEM((bm, HIDDEN_DIM2), jnp.float32),
            ],
        ),
        compiler_params=pltpu.CompilerParams(
            dimension_semantics=("parallel",),
        ),
    )(xb, w1b, b1, w2b, b2, w3b, b3p)

    # Slice off the batch padding and the padded output lanes.
    return out_padded[:B, :OUTPUT_DIM]


def init_params(key):
    """Deterministic init mimicking nn.Linear's U(-1/sqrt(fan_in), 1/sqrt(fan_in))."""
    def linear(key, fan_in, fan_out):
        kw, kb = jax.random.split(key)
        bound = 1.0 / jnp.sqrt(fan_in)
        # stored as (in, out) == torch weight.T
        w = jax.random.uniform(kw, (fan_in, fan_out), jnp.float32, -bound, bound)
        b = jax.random.uniform(kb, (1, fan_out), jnp.float32, -bound, bound)
        return w, b

    k1, k2, k3 = jax.random.split(key, 3)
    w1, b1 = linear(k1, INPUT_DIM, HIDDEN_DIM1)
    w2, b2 = linear(k2, HIDDEN_DIM1, HIDDEN_DIM2)
    w3, b3 = linear(k3, HIDDEN_DIM2, OUTPUT_DIM)
    return (w1, b1, w2, b2, w3, b3)


def ref_forward(x, params):
    """Plain-JAX reference using the same bf16 input/weight precision and f32 accumulation."""
    w1, b1, w2, b2, w3, b3 = params
    bf = jnp.bfloat16
    h = jnp.maximum(jnp.dot(x.astype(bf), w1.astype(bf),
                            preferred_element_type=jnp.float32) + b1, 0.0)
    h = jnp.maximum(jnp.dot(h.astype(bf), w2.astype(bf),
                            preferred_element_type=jnp.float32) + b2, 0.0)
    h = jnp.maximum(jnp.dot(h.astype(bf), w3.astype(bf),
                            preferred_element_type=jnp.float32) + b3, 0.0)
    return h


if __name__ == "__main__":
    key = jax.random.PRNGKey(0)
    kx, kp = jax.random.split(key)

    B = 16  # small batch for the self-test (wrapper scales bm with B)
    x = jax.random.normal(kx, (B, INPUT_DIM), jnp.float32)
    params = init_params(kp)

    out = jax.block_until_ready(mlp_forward(x, params))

    ref = ref_forward(x, params)
    assert out.shape == (B, OUTPUT_DIM)
    assert jnp.allclose(out, ref, atol=5e-3, rtol=5e-3), (
        "max abs err = %f" % float(jnp.max(jnp.abs(out - ref))))

    print("KERNEL_OK")
</pallas_src>

<mosaic_0001>
module attributes {stable_mosaic.version = 11 : i64} {
  func.func @mlp_kernel(%arg0: i32, %arg1: memref<8x784xbf16, #tpu.memory_space<vmem>>, %arg2: memref<784x128xbf16, #tpu.memory_space<vmem>>, %arg3: memref<1x128xf32, #tpu.memory_space<vmem>>, %arg4: memref<128x128xbf16, #tpu.memory_space<vmem>>, %arg5: memref<1x128xf32, #tpu.memory_space<vmem>>, %arg6: memref<128x128xbf16, #tpu.memory_space<vmem>>, %arg7: memref<1x128xf32, #tpu.memory_space<vmem>>, %arg8: memref<8x128xf32, #tpu.memory_space<vmem>>, %arg9: memref<8x128xf32, #tpu.memory_space<vmem>>, %arg10: memref<8x128xf32, #tpu.memory_space<vmem>>) attributes {dimension_semantics = [#tpu.dimension_semantics<parallel>], iteration_bounds = array<i64: 2>, scalar_prefetch = 0 : i64, scratch_operands = 2 : i64, tpu.core_type = #tpu.core_type<tc>, window_params = [{transform_indices = @transform_0, window_bounds = array<i64: 8, 784>}, {pipeline_mode = #tpu.pipeline_mode<synchronous>, transform_indices = @transform_1, window_bounds = array<i64: 784, 128>}, {pipeline_mode = #tpu.pipeline_mode<synchronous>, transform_indices = @transform_2, window_bounds = array<i64: 1, 128>}, {pipeline_mode = #tpu.pipeline_mode<synchronous>, transform_indices = @transform_3, window_bounds = array<i64: 128, 128>}, {pipeline_mode = #tpu.pipeline_mode<synchronous>, transform_indices = @transform_4, window_bounds = array<i64: 1, 128>}, {pipeline_mode = #tpu.pipeline_mode<synchronous>, transform_indices = @transform_5, window_bounds = array<i64: 128, 128>}, {pipeline_mode = #tpu.pipeline_mode<synchronous>, transform_indices = @transform_6, window_bounds = array<i64: 1, 128>}, {transform_indices = @transform_7, window_bounds = array<i64: 8, 128>}]} {
    %c0 = arith.constant 0 : index
    %c0_0 = arith.constant 0 : index
    %0 = vector.load %arg1[%c0, %c0_0] : memref<8x784xbf16, #tpu.memory_space<vmem>>, vector<8x784xbf16>
    %c0_1 = arith.constant 0 : index
    %c0_2 = arith.constant 0 : index
    %1 = vector.load %arg2[%c0_1, %c0_2] : memref<784x128xbf16, #tpu.memory_space<vmem>>, vector<784x128xbf16>
    %cst = arith.constant dense<0.000000e+00> : vector<8x128xf32>
    %2 = tpu.matmul %0, %1, %cst {dimension_numbers = #tpu.dot_dimension_numbers<[1], [0], [0], [1], [0, 0, 1, 1], [], []>} : vector<8x784xbf16>, vector<784x128xbf16>, vector<8x128xf32> -> vector<8x128xf32>
    %c0_3 = arith.constant 0 : index
    %c0_4 = arith.constant 0 : index
    %3 = vector.load %arg3[%c0_3, %c0_4] : memref<1x128xf32, #tpu.memory_space<vmem>>, vector<1x128xf32>
    %4 = vector.broadcast %3 : vector<1x128xf32> to vector<8x128xf32>
    %5 = arith.addf %2, %4 : vector<8x128xf32>
    %cst_5 = arith.constant 0.000000e+00 : f32
    %6 = vector.broadcast %cst_5 : f32 to vector<8x128xf32>
    %7 = arith.maximumf %5, %6 : vector<8x128xf32>
    %c0_6 = arith.constant 0 : index
    %c0_7 = arith.constant 0 : index
    %8 = vector.load %arg9[%c0_6, %c0_7] : memref<8x128xf32, #tpu.memory_space<vmem>>, vector<8x128xf32>
    tpu.vector_store %arg9[%c0_6, %c0_7], %7 {strides = array<i32>} : memref<8x128xf32, #tpu.memory_space<vmem>>, vector<8x128xf32>,
    %c0_8 = arith.constant 0 : index
    %c0_9 = arith.constant 0 : index
    %9 = vector.load %arg9[%c0_8, %c0_9] : memref<8x128xf32, #tpu.memory_space<vmem>>, vector<8x128xf32>
    %10 = arith.truncf %9 : vector<8x128xf32> to vector<8x128xbf16>
    %c0_10 = arith.constant 0 : index
    %c0_11 = arith.constant 0 : index
    %11 = vector.load %arg4[%c0_10, %c0_11] : memref<128x128xbf16, #tpu.memory_space<vmem>>, vector<128x128xbf16>
    %cst_12 = arith.constant dense<0.000000e+00> : vector<8x128xf32>
    %12 = tpu.matmul %10, %11, %cst_12 {dimension_numbers = #tpu.dot_dimension_numbers<[1], [0], [0], [1], [0, 0, 1, 1], [], []>} : vector<8x128xbf16>, vector<128x128xbf16>, vector<8x128xf32> -> vector<8x128xf32>
    %c0_13 = arith.constant 0 : index
    %c0_14 = arith.constant 0 : index
    %13 = vector.load %arg5[%c0_13, %c0_14] : memref<1x128xf32, #tpu.memory_space<vmem>>, vector<1x128xf32>
    %14 = vector.broadcast %13 : vector<1x128xf32> to vector<8x128xf32>
    %15 = arith.addf %12, %14 : vector<8x128xf32>
    %cst_15 = arith.constant 0.000000e+00 : f32
    %16 = vector.broadcast %cst_15 : f32 to vector<8x128xf32>
    %17 = arith.maximumf %15, %16 : vector<8x128xf32>
    %c0_16 = arith.constant 0 : index
    %c0_17 = arith.constant 0 : index
    %18 = vector.load %arg10[%c0_16, %c0_17] : memref<8x128xf32, #tpu.memory_space<vmem>>, vector<8x128xf32>
    tpu.vector_store %arg10[%c0_16, %c0_17], %17 {strides = array<i32>} : memref<8x128xf32, #tpu.memory_space<vmem>>, vector<8x128xf32>,
    %c0_18 = arith.constant 0 : index
    %c0_19 = arith.constant 0 : index
    %19 = vector.load %arg10[%c0_18, %c0_19] : memref<8x128xf32, #tpu.memory_space<vmem>>, vector<8x128xf32>
    %20 = arith.truncf %19 : vector<8x128xf32> to vector<8x128xbf16>
    %c0_20 = arith.constant 0 : index
    %c0_21 = arith.constant 0 : index
    %21 = vector.load %arg6[%c0_20, %c0_21] : memref<128x128xbf16, #tpu.memory_space<vmem>>, vector<128x128xbf16>
    %cst_22 = arith.constant dense<0.000000e+00> : vector<8x128xf32>
    %22 = tpu.matmul %20, %21, %cst_22 {dimension_numbers = #tpu.dot_dimension_numbers<[1], [0], [0], [1], [0, 0, 1, 1], [], []>} : vector<8x128xbf16>, vector<128x128xbf16>, vector<8x128xf32> -> vector<8x128xf32>
    %c0_23 = arith.constant 0 : index
    %c0_24 = arith.constant 0 : index
    %23 = vector.load %arg7[%c0_23, %c0_24] : memref<1x128xf32, #tpu.memory_space<vmem>>, vector<1x128xf32>
    %24 = vector.broadcast %23 : vector<1x128xf32> to vector<8x128xf32>
    %25 = arith.addf %22, %24 : vector<8x128xf32>
    %cst_25 = arith.constant 0.000000e+00 : f32
    %26 = vector.broadcast %cst_25 : f32 to vector<8x128xf32>
    %27 = arith.maximumf %25, %26 : vector<8x128xf32>
    %c0_26 = arith.constant 0 : index
    %c0_27 = arith.constant 0 : index
    %28 = vector.load %arg8[%c0_26, %c0_27] : memref<8x128xf32, #tpu.memory_space<vmem>>, vector<8x128xf32>
    tpu.vector_store %arg8[%c0_26, %c0_27], %27 {strides = array<i32>} : memref<8x128xf32, #tpu.memory_space<vmem>>, vector<8x128xf32>,
    return
  }
  func.func @transform_0(%arg0: i32) -> (i32, i32) {
    %c0_i32 = arith.constant 0 : i32
    %c0_i32_0 = arith.constant 0 : i32
    return %arg0, %c0_i32 : i32, i32
  }
  func.func @transform_1(%arg0: i32) -> (i32, i32) {
    %c0_i32 = arith.constant 0 : i32
    %c0_i32_0 = arith.constant 0 : i32
    %c0_i32_1 = arith.constant 0 : i32
    return %c0_i32, %c0_i32_0 : i32, i32
  }
  func.func @transform_2(%arg0: i32) -> (i32, i32) {
    %c0_i32 = arith.constant 0 : i32
    %c0_i32_0 = arith.constant 0 : i32
    %c0_i32_1 = arith.constant 0 : i32
    return %c0_i32, %c0_i32_0 : i32, i32
  }
  func.func @transform_3(%arg0: i32) -> (i32, i32) {
    %c0_i32 = arith.constant 0 : i32
    %c0_i32_0 = arith.constant 0 : i32
    %c0_i32_1 = arith.constant 0 : i32
    return %c0_i32, %c0_i32_0 : i32, i32
  }
  func.func @transform_4(%arg0: i32) -> (i32, i32) {
    %c0_i32 = arith.constant 0 : i32
    %c0_i32_0 = arith.constant 0 : i32
    %c0_i32_1 = arith.constant 0 : i32
    return %c0_i32, %c0_i32_0 : i32, i32
  }
  func.func @transform_5(%arg0: i32) -> (i32, i32) {
    %c0_i32 = arith.constant 0 : i32
    %c0_i32_0 = arith.constant 0 : i32
    %c0_i32_1 = arith.constant 0 : i32
    return %c0_i32, %c0_i32_0 : i32, i32
  }
  func.func @transform_6(%arg0: i32) -> (i32, i32) {
    %c0_i32 = arith.constant 0 : i32
    %c0_i32_0 = arith.constant 0 : i32
    %c0_i32_1 = arith.constant 0 : i32
    return %c0_i32, %c0_i32_0 : i32, i32
  }
  func.func @transform_7(%arg0: i32) -> (i32, i32) {
    %c0_i32 = arith.constant 0 : i32
    %c0_i32_0 = arith.constant 0 : i32
    return %arg0, %c0_i32 : i32, i32
  }
}

</mosaic_0001>

<llo_original>
// kernel: tpu_custom_call.1
$region0: #{tpu_custom_call.1}
  #allocation0 [shape = 'u32[]', space=smem, size = 0x4, offset = 0x4, fixed_abs, tag = 'smem constant byte address 0x4 - core index']
  #allocation1 [shape = 'u32[72,128]{1,0:T(1,128)}', space=vmem, size = 0x9000, scoped, tag = 'internal scratch']
  #allocation2 [shape = 'f32[8,128]{1,0:T(8,128)}', space=vmem, size = 0x1000, scoped, tag = 'scratch operand']
  #allocation3 [shape = 'f32[8,128]{1,0:T(8,128)}', space=vmem, size = 0x1000, scoped, tag = 'scratch operand']
  %s0 = inlined_call_operand.hbm [shape: bf16[16,784], index: 0, kind: input, shape index: {}]
  %s1 = inlined_call_operand.hbm [shape: bf16[784,128], index: 1, kind: input, shape index: {}]
  %s2 = inlined_call_operand.vmem [shape: f32[1,128], index: 2, kind: input, shape index: {}]
  %s3 = inlined_call_operand.hbm [shape: bf16[128,128], index: 3, kind: input, shape index: {}]
  %s4 = inlined_call_operand.vmem [shape: f32[1,128], index: 4, kind: input, shape index: {}]
  %s5 = inlined_call_operand.hbm [shape: bf16[128,128], index: 5, kind: input, shape index: {}]
  %s6 = inlined_call_operand.vmem [shape: f32[1,128], index: 6, kind: input, shape index: {}]
  %s7 = inlined_call_operand.hbm [shape: f32[16,128], index: 7, kind: output, shape index: {}]
  %s8 = sld [smem:[#allocation0]]
  $region77: #{tpu_custom_call.1} parent=0
    _
  %s10 = ssub.s32 1, %s8
  %s11 = scalar_select 0, %s10, %s8
  $region1: #{tpu_custom_call.1} parent=0
    #allocation4 [shape = 'u8[28672]{0}', space=vmem, size = 0x7000, scoped, tag = 'input window, operand 0']
    #allocation5 [shape = 's32[2]{0}', space=sflag, size = 0x8, scoped, tag = 'scoped memory for tpu_custom_call.1']
    #allocation6 [shape = 's32[2]{0}', space=sflag, size = 0x8, scoped, tag = 'scoped memory for tpu_custom_call.1']
    #allocation7 [shape = 'u8[200704]{0}', space=vmem, size = 0x31000, scoped, tag = 'input window, operand 1, single buffered']
    #allocation8 [shape = 's32[1]{0}', space=sflag, size = 0x4, scoped, tag = 'scoped memory for tpu_custom_call.1']
    #allocation9 [shape = 'u8[32768]{0}', space=vmem, size = 0x8000, scoped, tag = 'input window, operand 3, single buffered']
    #allocation10 [shape = 'u8[32768]{0}', space=vmem, size = 0x8000, scoped, tag = 'input window, operand 5, single buffered']
    #allocation11 [shape = 's32[1]{0}', space=sflag, size = 0x4, scoped, tag = 'scoped memory for tpu_custom_call.1']
    #allocation12 [shape = 'u8[8192]{0}', space=vmem, size = 0x2000, scoped, tag = 'output window, operand 0']
    %12 = vsyncpa [#allocation5], 0
    %s13 = scalar_lea.sflag [#allocation5], 1
    %14 = vsyncpa %s13, 0
    %15 = vsyncpa [#allocation8], 0
    %16 = vsyncpa [#allocation11], 0
    %17 = vsyncpa [#allocation6], 0
    %s18 = scalar_lea.sflag [#allocation6], 1
    %19 = vsyncpa %s18, 0
    loop: start=0, step=1, limit=4
    $region2: #{tpu_custom_call.1} parent=1 // loop_pre_header
      _
    $region3: #{tpu_custom_call.1} parent=1 // loop_header
      %s21 = sphi 0, %s25
      %p22 = scmp.ge.s32.totalorder %s21, 4
      %s31 = sphi 0, %s33
      %s34 = sphi 0, %s31
      %s35 = sphi 0, %s34
      %s51 = sphi 0, %s35
      %s55 = sphi 0, %s55
      %s57 = sphi 0, %s55
      %s58 = sphi 0, %s57
      %s72 = sphi 0, %s58
      %s76 = sphi 0, %s76
      %s78 = sphi 0, %s76
      %s79 = sphi 0, %s78
      %s93 = sphi 0, %s79
      %s97 = sphi 0, %s97
      %s99 = sphi 0, %s97
      %s100 = sphi 0, %s99
      %s114 = sphi 0, %s100
      %s118 = sphi 0, %s118
      %s120 = sphi 0, %s118
      %s121 = sphi 0, %s120
      %s135 = sphi 0, %s121
      %s139 = sphi 0, %s139
      %s141 = sphi 0, %s139
      %s142 = sphi 0, %s141
      %s156 = sphi 0, %s142
      %s160 = sphi 0, %s160
      %s162 = sphi 0, %s160
      %s163 = sphi 0, %s162
      %s177 = sphi 0, %s163
      %s183 = sphi 0, %s185
      %s186 = sphi 0, %s183
      %s187 = sphi 0, %s186
      %s203 = sphi 0, %s187
    $region4: #{tpu_custom_call.1} parent=1 // loop_header_branch
      %24 = sbr.rel (%p22) target = $region8
    $region5: #{tpu_custom_call.1} parent=1 // loop_body
      %s26 = ssub.s32 %s21, 1
      %s27 = ssub.s32 %s21, 2
      %s28 = sadd.s32 %s21, 1
      %s29 = ssub.s32 %s21, %s28
      %p30 = scmp.eq.s32.totalorder %s29, 0
      %s32 = sadd.s32 %s31, 1
      %s33 = scalar_select %p30, %s31, %s32
      %p36 = pneg %p30
      %p37 = scmp.eq.s32.totalorder %s21, 1
      %p38 = por %p36, %p37
      %p39 = scmp.ne.s32.totalorder %s31, %s34
      %p40 = scmp.eq.s32.totalorder %s21, 0
      %p41 = por %p39, %p40
      %p42 = scmp.ne.s32.totalorder %s31, %s34
      %p43 = scmp.eq.s32.totalorder %s26, 1
      %p44 = por %p42, %p43
      %p45 = scmp.ne.s32.totalorder %s34, %s35
      %p46 = scmp.eq.s32.totalorder %s26, 0
      %p47 = por %p45, %p46
      %p48 = scmp.ne.s32.totalorder %s34, %s35
      %p49 = scmp.eq.s32.totalorder %s27, 1
      %p50 = por %p48, %p49
      %p52 = scmp.ne.s32.totalorder %s35, %s51
      %p53 = scmp.eq.s32.totalorder %s27, 0
      %p54 = por %p52, %p53
      %s56 = sadd.s32 %s55, 1
      %p59 = scmp.eq.s32.totalorder %s21, 1
      %p60 = scmp.ne.s32.totalorder %s55, %s57
      %p61 = scmp.eq.s32.totalorder %s21, 0
      %p62 = por %p60, %p61
      %p63 = scmp.ne.s32.totalorder %s55, %s57
      %p64 = scmp.eq.s32.totalorder %s26, 1
      %p65 = por %p63, %p64
      %p66 = scmp.ne.s32.totalorder %s57, %s58
      %p67 = scmp.eq.s32.totalorder %s26, 0
      %p68 = por %p66, %p67
      %p69 = scmp.ne.s32.totalorder %s57, %s58
      %p70 = scmp.eq.s32.totalorder %s27, 1
      %p71 = por %p69, %p70
      %p73 = scmp.ne.s32.totalorder %s58, %s72
      %p74 = scmp.eq.s32.totalorder %s27, 0
      %p75 = por %p73, %p74
      %s77 = sadd.s32 %s76, 1
      %p80 = scmp.eq.s32.totalorder %s21, 1
      %p81 = scmp.ne.s32.totalorder %s76, %s78
      %p82 = scmp.eq.s32.totalorder %s21, 0
      %p83 = por %p81, %p82
      %p84 = scmp.ne.s32.totalorder %s76, %s78
      %p85 = scmp.eq.s32.totalorder %s26, 1
      %p86 = por %p84, %p85
      %p87 = scmp.ne.s32.totalorder %s78, %s79
      %p88 = scmp.eq.s32.totalorder %s26, 0
      %p89 = por %p87, %p88
      %p90 = scmp.ne.s32.totalorder %s78, %s79
      %p91 = scmp.eq.s32.totalorder %s27, 1
      %p92 = por %p90, %p91
      %p94 = scmp.ne.s32.totalorder %s79, %s93
      %p95 = scmp.eq.s32.totalorder %s27, 0
      %p96 = por %p94, %p95
      %s98 = sadd.s32 %s97, 1
      %p101 = scmp.eq.s32.totalorder %s21, 1
      %p102 = scmp.ne.s32.totalorder %s97, %s99
      %p103 = scmp.eq.s32.totalorder %s21, 0
      %p104 = por %p102, %p103
      %p105 = scmp.ne.s32.totalorder %s97, %s99
      %p106 = scmp.eq.s32.totalorder %s26, 1
      %p107 = por %p105, %p106
      %p108 = scmp.ne.s32.totalorder %s99, %s100
      %p109 = scmp.eq.s32.totalorder %s26, 0
      %p110 = por %p108, %p109
      %p111 = scmp.ne.s32.totalorder %s99, %s100
      %p112 = scmp.eq.s32.totalorder %s27, 1
      %p113 = por %p111, %p112
      %p115 = scmp.ne.s32.totalorder %s100, %s114
      %p116 = scmp.eq.s32.totalorder %s27, 0
      %p117 = por %p115, %p116
      %s119 = sadd.s32 %s118, 1
      %p122 = scmp.eq.s32.totalorder %s21, 1
      %p123 = scmp.ne.s32.totalorder %s118, %s120
      %p124 = scmp.eq.s32.totalorder %s21, 0
      %p125 = por %p123, %p124
      %p126 = scmp.ne.s32.totalorder %s118, %s120
      %p127 = scmp.eq.s32.totalorder %s26, 1
      %p128 = por %p126, %p127
      %p129 = scmp.ne.s32.totalorder %s120, %s121
      %p130 = scmp.eq.s32.totalorder %s26, 0
      %p131 = por %p129, %p130
      %p132 = scmp.ne.s32.totalorder %s120, %s121
      %p133 = scmp.eq.s32.totalorder %s27, 1
      %p134 = por %p132, %p133
      %p136 = scmp.ne.s32.totalorder %s121, %s135
      %p137 = scmp.eq.s32.totalorder %s27, 0
      %p138 = por %p136, %p137
      %s140 = sadd.s32 %s139, 1
      %p143 = scmp.eq.s32.totalorder %s21, 1
      %p144 = scmp.ne.s32.totalorder %s139, %s141
      %p145 = scmp.eq.s32.totalorder %s21, 0
      %p146 = por %p144, %p145
      %p147 = scmp.ne.s32.totalorder %s139, %s141
      %p148 = scmp.eq.s32.totalorder %s26, 1
      %p149 = por %p147, %p148
      %p150 = scmp.ne.s32.totalorder %s141, %s142
      %p151 = scmp.eq.s32.totalorder %s26, 0
      %p152 = por %p150, %p151
      %p153 = scmp.ne.s32.totalorder %s141, %s142
      %p154 = scmp.eq.s32.totalorder %s27, 1
      %p155 = por %p153, %p154
      %p157 = scmp.ne.s32.totalorder %s142, %s156
      %p158 = scmp.eq.s32.totalorder %s27, 0
      %p159 = por %p157, %p158
      %s161 = sadd.s32 %s160, 1
      %p164 = scmp.eq.s32.totalorder %s21, 1
      %p165 = scmp.ne.s32.totalorder %s160, %s162
      %p166 = scmp.eq.s32.totalorder %s21, 0
      %p167 = por %p165, %p166
      %p168 = scmp.ne.s32.totalorder %s160, %s162
      %p169 = scmp.eq.s32.totalorder %s26, 1
      %p170 = por %p168, %p169
      %p171 = scmp.ne.s32.totalorder %s162, %s163
      %p172 = scmp.eq.s32.totalorder %s26, 0
      %p173 = por %p171, %p172
      %p174 = scmp.ne.s32.totalorder %s162, %s163
      %p175 = scmp.eq.s32.totalorder %s27, 1
      %p176 = por %p174, %p175
      %p178 = scmp.ne.s32.totalorder %s163, %s177
      %p179 = scmp.eq.s32.totalorder %s27, 0
      %p180 = por %p178, %p179
      %s181 = ssub.s32 %s21, %s28
      %p182 = scmp.eq.s32.totalorder %s181, 0
      %s184 = sadd.s32 %s183, 1
      %s185 = scalar_select %p182, %s183, %s184
      %p188 = pneg %p182
      %p189 = scmp.eq.s32.totalorder %s21, 1
      %p190 = por %p188, %p189
      %p191 = scmp.ne.s32.totalorder %s183, %s186
      %p192 = scmp.eq.s32.totalorder %s21, 0
      %p193 = por %p191, %p192
      %p194 = scmp.ne.s32.totalorder %s183, %s186
      %p195 = scmp.eq.s32.totalorder %s26, 1
      %p196 = por %p194, %p195
      %p197 = scmp.ne.s32.totalorder %s186, %s187
      %p198 = scmp.eq.s32.totalorder %s26, 0
      %p199 = por %p197, %p198
      %p200 = scmp.ne.s32.totalorder %s186, %s187
      %p201 = scmp.eq.s32.totalorder %s27, 1
      %p202 = por %p200, %p201
      %p204 = scmp.ne.s32.totalorder %s187, %s203
      %p205 = scmp.eq.s32.totalorder %s27, 0
      %p206 = por %p204, %p205
      %p207 = scmp.le.s32.totalorder 1, %s21
      %p208 = scmp.lt.s32.totalorder %s21, 3
      %p209 = pnand %p207, %p208
      %p210 = pneg %p209
      // Predicated region
      $region9: #{tpu_custom_call.1} parent=5 // pred_check
        _
      $region10: #{tpu_custom_call.1} parent=5 // pred_check_branch
        %212 = sbr.rel (%p209) target = $region12
      $region11: #{tpu_custom_call.1} parent=5 // pred_region
        %s213 = ssub.s32 %s21, 1
        // Predicated region
        $region13: #{tpu_custom_call.1} parent=11 // pred_check
          %p214 = pneg %p68
        $region14: #{tpu_custom_call.1} parent=11 // pred_check_branch
          %216 = sbr.rel (%p214) target = $region16
        $region15: #{tpu_custom_call.1} parent=11 // pred_region
          %218 = vsyncadd [#allocation8], 0
          %s219 = sshll.u32 %s1, 4
          %s220 = int_to_ptr.hbm [resolvable:$true] %s219
          %s221 = sshll.u32 [#allocation7], 4
          %s222 = int_to_ptr.vmem [resolvable:$true] %s221
          %227 = dma.hbm_to_vmem [thread:$0]  %s220, 6272, %s222, [#allocation8], 64, 64, 4
        $region16: #{tpu_custom_call.1} parent=11 // pred_fallthru
          _
        // Predicated region
        $region17: #{tpu_custom_call.1} parent=11 // pred_check
          %p228 = pneg %p89
        $region18: #{tpu_custom_call.1} parent=11 // pred_check_branch
          %230 = sbr.rel (%p228) target = $region20
        $region19: #{tpu_custom_call.1} parent=11 // pred_region
          _
        $region20: #{tpu_custom_call.1} parent=11 // pred_fallthru
          _
        // Predicated region
        $region21: #{tpu_custom_call.1} parent=11 // pred_check
          %p231 = pneg %p110
        $region22: #{tpu_custom_call.1} parent=11 // pred_check_branch
          %233 = sbr.rel (%p231) target = $region24
        $region23: #{tpu_custom_call.1} parent=11 // pred_region
          %235 = vsyncadd [#allocation8], 0
          %s236 = sshll.u32 %s3, 4
          %s237 = int_to_ptr.hbm [resolvable:$true] %s236
          %s238 = sshll.u32 [#allocation9], 4
          %s239 = int_to_ptr.vmem [resolvable:$true] %s238
          %244 = dma.hbm_to_vmem [thread:$0]  %s237, 1024, %s239, [#allocation8], 64, 64, 4
        $region24: #{tpu_custom_call.1} parent=11 // pred_fallthru
          _
        // Predicated region
        $region25: #{tpu_custom_call.1} parent=11 // pred_check
          %p245 = pneg %p131
        $region26: #{tpu_custom_call.1} parent=11 // pred_check_branch
          %247 = sbr.rel (%p245) target = $region28
        $region27: #{tpu_custom_call.1} parent=11 // pred_region
          _
        $region28: #{tpu_custom_call.1} parent=11 // pred_fallthru
          _
        // Predicated region
        $region29: #{tpu_custom_call.1} parent=11 // pred_check
          %p248 = pneg %p152
        $region30: #{tpu_custom_call.1} parent=11 // pred_check_branch
          %250 = sbr.rel (%p248) target = $region32
        $region31: #{tpu_custom_call.1} parent=11 // pred_region
          %252 = vsyncadd [#allocation11], 0
          %s253 = sshll.u32 %s5, 4
          %s254 = int_to_ptr.hbm [resolvable:$true] %s253
          %s255 = sshll.u32 [#allocation10], 4
          %s256 = int_to_ptr.vmem [resolvable:$true] %s255
          %261 = dma.hbm_to_vmem [thread:$0]  %s254, 1024, %s256, [#allocation11], 64, 64, 4
        $region32: #{tpu_custom_call.1} parent=11 // pred_fallthru
          _
        // Predicated region
        $region33: #{tpu_custom_call.1} parent=11 // pred_check
          %p262 = pneg %p173
        $region34: #{tpu_custom_call.1} parent=11 // pred_check_branch
          %264 = sbr.rel (%p262) target = $region36
        $region35: #{tpu_custom_call.1} parent=11 // pred_region
          _
        $region36: #{tpu_custom_call.1} parent=11 // pred_fallthru
          _
      $region12: #{tpu_custom_call.1} parent=5 // pred_fallthru
        _
      %p265 = scmp.lt.s32.totalorder %s21, 2
      // Predicated region
      $region37: #{tpu_custom_call.1} parent=5 // pred_check
        %p266 = pneg %p265
      $region38: #{tpu_custom_call.1} parent=5 // pred_check_branch
        %268 = sbr.rel (%p266) target = $region40
      $region39: #{tpu_custom_call.1} parent=5 // pred_region
        // Predicated region
        $region41: #{tpu_custom_call.1} parent=39 // pred_check
          %p269 = pneg %p41
        $region42: #{tpu_custom_call.1} parent=39 // pred_check_branch
          %271 = sbr.rel (%p269) target = $region44
        $region43: #{tpu_custom_call.1} parent=39 // pred_region
          %s272 = sand.u32 %s31, 1
          %s273 = scalar_lea.sflag [#allocation5], %s272
          %s274 = sand.u32 %s31, 1
          %s275 = smul.addr %s274, 28
          %s276 = scalar_lea.vmem [#allocation4], %s275
          %278 = vsyncadd %s273, 0
          %s279 = smul.addr %s21, 7
          %s280 = smul.addr %s279, 4
          %s281 = scalar_lea.hbm %s0, %s280
          %s283 = sshll.u32 %s281, 4
          %s284 = int_to_ptr.hbm [resolvable:$true] %s283
          %s285 = sshll.u32 %s276, 4
          %s286 = int_to_ptr.vmem [resolvable:$true] %s285
          %288 = dma.hbm_to_vmem [thread:$0]  %s284, 448, %s286, %s273
        $region44: #{tpu_custom_call.1} parent=39 // pred_fallthru
          _
      $region40: #{tpu_custom_call.1} parent=5 // pred_fallthru
        _
      %p289 = scmp.le.s32.totalorder 1, %s21
      %p290 = scmp.lt.s32.totalorder %s21, 3
      %p291 = pnand %p289, %p290
      %p292 = pneg %p291
      // Predicated region
      $region45: #{tpu_custom_call.1} parent=5 // pred_check
        _
      $region46: #{tpu_custom_call.1} parent=5 // pred_check_branch
        %294 = sbr.rel (%p291) target = $region48
      $region47: #{tpu_custom_call.1} parent=5 // pred_region
        %s295 = ssub.s32 %s21, 1
        %s296 = sand.u32 %s34, 1
        %s297 = scalar_lea.sflag [#allocation5], %s296
        %s298 = sand.u32 %s34, 1
        %s299 = smul.addr %s298, 28
        %s300 = scalar_lea.vmem [#allocation4], %s299
        // Predicated region
        $region49: #{tpu_custom_call.1} parent=47 // pred_check
          %p301 = pneg %p47
        $region50: #{tpu_custom_call.1} parent=47 // pred_check_branch
          %303 = sbr.rel (%p301) target = $region52
        $region51: #{tpu_custom_call.1} parent=47 // pred_region
          %305 = dma.done %s297, 448
        $region52: #{tpu_custom_call.1} parent=47 // pred_fallthru
          _
        // Predicated region
        $region53: #{tpu_custom_call.1} parent=47 // pred_check
          %p306 = pneg %p68
        $region54: #{tpu_custom_call.1} parent=47 // pred_check_branch
          %308 = sbr.rel (%p306) target = $region56
        $region55: #{tpu_custom_call.1} parent=47 // pred_region
          %310 = dma.done [#allocation8], 6272
        $region56: #{tpu_custom_call.1} parent=47 // pred_fallthru
          _
        // Predicated region
        $region57: #{tpu_custom_call.1} parent=47 // pred_check
          %p311 = pneg %p110
        $region58: #{tpu_custom_call.1} parent=47 // pred_check_branch
          %313 = sbr.rel (%p311) target = $region60
        $region59: #{tpu_custom_call.1} parent=47 // pred_region
          %315 = dma.done [#allocation8], 1024
        $region60: #{tpu_custom_call.1} parent=47 // pred_fallthru
          _
        // Predicated region
        $region61: #{tpu_custom_call.1} parent=47 // pred_check
          %p316 = pneg %p152
        $region62: #{tpu_custom_call.1} parent=47 // pred_check_branch
          %318 = sbr.rel (%p316) target = $region64
        $region63: #{tpu_custom_call.1} parent=47 // pred_region
          %320 = dma.done [#allocation11], 1024
        $region64: #{tpu_custom_call.1} parent=47 // pred_fallthru
          _
        %s321 = sand.u32 %s34, 1
        %s322 = scalar_lea.sflag [#allocation5], %s321
        %s323 = sand.u32 %s34, 1
        %s324 = smul.addr %s323, 28
        %s325 = scalar_lea.vmem [#allocation4], %s324
        %p326 = pneg %p47
        %p327 = pneg %p44
        %p328 = pneg %p68
        %p329 = pneg %p65
        %p330 = pneg %p89
        %p331 = pneg %p86
        %p332 = pneg %p110
        %p333 = pneg %p107
        %p334 = pneg %p131
        %p335 = pneg %p128
        %p336 = pneg %p152
        %p337 = pneg %p149
        %p338 = pneg %p173
        %p339 = pneg %p170
        %p340 = pneg %p199
        %p341 = pneg %p196
        %s342 = sand.u32 %s186, 1
        %s343 = scalar_lea.sflag [#allocation6], %s342
        %s344 = sand.u32 %s186, 1
        %s345 = smul.addr %s344, 8
        %s346 = scalar_lea.vmem [#allocation12], %s345
        %v348 = vld [vmem:[%s300] sm:$0xff]
        %v349 = vld [vmem:[%s300 + $0x8] sm:$0xff]
        %v350 = vld [vmem:[%s300 + $0x10] sm:$0xff]
        %v351 = vld [vmem:[%s300 + $0x18] sm:$0xf]
        %v352 = vld [vmem:[#allocation7] sm:$0xf]
        %v353 = vld [vmem:[#allocation7 + $0x4] sm:$0xf]
        %v354 = vld [vmem:[#allocation7 + $0x8] sm:$0xf]
        %v355 = vld [vmem:[#allocation7 + $0xc] sm:$0xf]
        %v356 = vld [vmem:[#allocation7 + $0x10] sm:$0xf]
        %v357 = vld [vmem:[#allocation7 + $0x14] sm:$0xf]
        %v358 = vld [vmem:[#allocation7 + $0x18] sm:$0xf]
        %v359 = vld [vmem:[#allocation7 + $0x1c] sm:$0xf]
        %v360 = vld [vmem:[#allocation7 + $0x20] sm:$0xf]
        %v361 = vld [vmem:[#allocation7 + $0x24] sm:$0xf]
        %v362 = vld [vmem:[#allocation7 + $0x28] sm:$0xf]
        %v363 = vld [vmem:[#allocation7 + $0x2c] sm:$0xf]
        %v364 = vld [vmem:[#allocation7 + $0x30] sm:$0xf]
        %v365 = vld [vmem:[#allocation7 + $0x34] sm:$0xf]
        %v366 = vld [vmem:[#allocation7 + $0x38] sm:$0xf]
        %v367 = vld [vmem:[#allocation7 + $0x3c] sm:$0xf]
        %v368 = vld [vmem:[#allocation7 + $0x40] sm:$0xf]
        %v369 = vld [vmem:[#allocation7 + $0x44] sm:$0xf]
        %v370 = vld [vmem:[#allocation7 + $0x48] sm:$0xf]
        %v371 = vld [vmem:[#allocation7 + $0x4c] sm:$0xf]
        %v372 = vld [vmem:[#allocation7 + $0x50] sm:$0xf]
        %v373 = vld [vmem:[#allocation7 + $0x54] sm:$0xf]
        %v374 = vld [vmem:[#allocation7 + $0x58] sm:$0xf]
        %v375 = vld [vmem:[#allocation7 + $0x5c] sm:$0xf]
        %v376 = vld [vmem:[#allocation7 + $0x60] sm:$0xf]
        %v377 = vld [vmem:[#allocation7 + $0x64] sm:$0xf]
        %v378 = vld [vmem:[#allocation7 + $0x68] sm:$0xf]
        %v379 = vld [vmem:[#allocation7 + $0x6c] sm:$0xf]
        %v380 = vld [vmem:[#allocation7 + $0x70] sm:$0xf]
        %v381 = vld [vmem:[#allocation7 + $0x74] sm:$0xf]
        %v382 = vld [vmem:[#allocation7 + $0x78] sm:$0xf]
        %v383 = vld [vmem:[#allocation7 + $0x7c] sm:$0xf]
        %v384 = vld [vmem:[#allocation7 + $0x80] sm:$0xf]
        %v385 = vld [vmem:[#allocation7 + $0x84] sm:$0xf]
        %v386 = vld [vmem:[#allocation7 + $0x88] sm:$0xf]
        %v387 = vld [vmem:[#allocation7 + $0x8c] sm:$0xf]
        %v388 = vld [vmem:[#allocation7 + $0x90] sm:$0xf]
        %v389 = vld [vmem:[#allocation7 + $0x94] sm:$0xf]
        %v390 = vld [vmem:[#allocation7 + $0x98] sm:$0xf]
        %v391 = vld [vmem:[#allocation7 + $0x9c] sm:$0xf]
        %v392 = vld [vmem:[#allocation7 + $0xa0] sm:$0xf]
        %v393 = vld [vmem:[#allocation7 + $0xa4] sm:$0xf]
        %v394 = vld [vmem:[#allocation7 + $0xa8] sm:$0xf]
        %v395 = vld [vmem:[#allocation7 + $0xac] sm:$0xf]
        %v396 = vld [vmem:[#allocation7 + $0xb0] sm:$0xf]
        %v397 = vld [vmem:[#allocation7 + $0xb4] sm:$0xf]
        %v398 = vld [vmem:[#allocation7 + $0xb8] sm:$0xf]
        %v399 = vld [vmem:[#allocation7 + $0xbc] sm:$0xf]
        %v400 = vld [vmem:[#allocation7 + $0xc0] sm:$0xf]
        %v401 = vld [vmem:[#allocation7 + $0xc4] sm:$0xf]
        %v402 = vld [vmem:[#allocation7 + $0xc8] sm:$0xf]
        %v403 = vld [vmem:[#allocation7 + $0xcc] sm:$0xf]
        %v404 = vld [vmem:[#allocation7 + $0xd0] sm:$0xf]
        %v405 = vld [vmem:[#allocation7 + $0xd4] sm:$0xf]
        %v406 = vld [vmem:[#allocation7 + $0xd8] sm:$0xf]
        %v407 = vld [vmem:[#allocation7 + $0xdc] sm:$0xf]
        %v408 = vld [vmem:[#allocation7 + $0xe0] sm:$0xf]
        %v409 = vld [vmem:[#allocation7 + $0xe4] sm:$0xf]
        %v410 = vld [vmem:[#allocation7 + $0xe8] sm:$0xf]
        %v411 = vld [vmem:[#allocation7 + $0xec] sm:$0xf]
        %v412 = vld [vmem:[#allocation7 + $0xf0] sm:$0xf]
        %v413 = vld [vmem:[#allocation7 + $0xf4] sm:$0xf]
        %v414 = vld [vmem:[#allocation7 + $0xf8] sm:$0xf]
        %v415 = vld [vmem:[#allocation7 + $0xfc] sm:$0xf]
        %v416 = vld [vmem:[#allocation7 + $0x100] sm:$0xf]
        %v417 = vld [vmem:[#allocation7 + $0x104] sm:$0xf]
        %v418 = vld [vmem:[#allocation7 + $0x108] sm:$0xf]
        %v419 = vld [vmem:[#allocation7 + $0x10c] sm:$0xf]
        %v420 = vld [vmem:[#allocation7 + $0x110] sm:$0xf]
        %v421 = vld [vmem:[#allocation7 + $0x114] sm:$0xf]
        %v422 = vld [vmem:[#allocation7 + $0x118] sm:$0xf]
        %v423 = vld [vmem:[#allocation7 + $0x11c] sm:$0xf]
        %v424 = vld [vmem:[#allocation7 + $0x120] sm:$0xf]
        %v425 = vld [vmem:[#allocation7 + $0x124] sm:$0xf]
        %v426 = vld [vmem:[#allocation7 + $0x128] sm:$0xf]
        %v427 = vld [vmem:[#allocation7 + $0x12c] sm:$0xf]
        %v428 = vld [vmem:[#allocation7 + $0x130] sm:$0xf]
        %v429 = vld [vmem:[#allocation7 + $0x134] sm:$0xf]
        %v430 = vld [vmem:[#allocation7 + $0x138] sm:$0xf]
        %v431 = vld [vmem:[#allocation7 + $0x13c] sm:$0xf]
        %v432 = vld [vmem:[#allocation7 + $0x140] sm:$0xf]
        %v433 = vld [vmem:[#allocation7 + $0x144] sm:$0xf]
        %v434 = vld [vmem:[#allocation7 + $0x148] sm:$0xf]
        %v435 = vld [vmem:[#allocation7 + $0x14c] sm:$0xf]
        %v436 = vld [vmem:[#allocation7 + $0x150] sm:$0xf]
        %v437 = vld [vmem:[#allocation7 + $0x154] sm:$0xf]
        %v438 = vld [vmem:[#allocation7 + $0x158] sm:$0xf]
        %v439 = vld [vmem:[#allocation7 + $0x15c] sm:$0xf]
        %v440 = vld [vmem:[#allocation7 + $0x160] sm:$0xf]
        %v441 = vld [vmem:[#allocation7 + $0x164] sm:$0xf]
        %v442 = vld [vmem:[#allocation7 + $0x168] sm:$0xf]
        %v443 = vld [vmem:[#allocation7 + $0x16c] sm:$0xf]
        %v444 = vld [vmem:[#allocation7 + $0x170] sm:$0xf]
        %v445 = vld [vmem:[#allocation7 + $0x174] sm:$0xf]
        %v446 = vld [vmem:[#allocation7 + $0x178] sm:$0xf]
        %v447 = vld [vmem:[#allocation7 + $0x17c] sm:$0xf]
        %v448 = vld [vmem:[#allocation7 + $0x180] sm:$0xf]
        %v449 = vld [vmem:[#allocation7 + $0x184] sm:$0xf]
        %v450 = vld [vmem:[%s2] sm:$0x1]
        %v452 = vperm.slane %v450, 0
        %v458 = vunpack.c.l.b16 %v348
        %v459 = vunpack.c.h.b16 %v348
        %v460 = vunpack.c.l.b16 %v349
        %v461 = vunpack.c.h.b16 %v349
        %v462 = vunpack.c.l.b16 %v350
        %v463 = vunpack.c.h.b16 %v350
        %v464 = vunpack.c.l.b16 %v351
        %v465 = vpack.c.b16 %v458, %v458
        %v466 = vpack.c.b16 %v459, %v459
        %v467 = vpack.c.b16 %v460, %v460
        %v468 = vpack.c.b16 %v461, %v461
        %v469 = vpack.c.b16 %v462, %v462
        %v470 = vpack.c.b16 %v463, %v463
        %v471 = vpack.c.b16 %v464, %v464
        %v576 = vunpack.c.l.b16 %v352
        %v577 = vunpack.c.l.b16 %v353
        %v578 = vunpack.c.l.b16 %v354
        %v579 = vunpack.c.l.b16 %v355
        %v580 = vunpack.c.l.b16 %v356
        %v581 = vunpack.c.l.b16 %v357
        %v582 = vunpack.c.l.b16 %v358
        %v583 = vunpack.c.l.b16 %v359
        %v584 = vunpack.c.l.b16 %v360
        %v585 = vunpack.c.l.b16 %v361
        %v586 = vunpack.c.l.b16 %v362
        %v587 = vunpack.c.l.b16 %v363
        %v588 = vunpack.c.l.b16 %v364
        %v589 = vunpack.c.l.b16 %v365
        %v590 = vunpack.c.l.b16 %v366
        %v591 = vunpack.c.l.b16 %v367
        %v592 = vunpack.c.l.b16 %v368
        %v593 = vunpack.c.l.b16 %v369
        %v594 = vunpack.c.l.b16 %v370
        %v595 = vunpack.c.l.b16 %v371
        %v596 = vunpack.c.l.b16 %v372
        %v597 = vunpack.c.l.b16 %v373
        %v598 = vunpack.c.l.b16 %v374
        %v599 = vunpack.c.l.b16 %v375
        %v600 = vunpack.c.l.b16 %v376
        %v601 = vunpack.c.l.b16 %v377
        %v602 = vunpack.c.l.b16 %v378
        %v603 = vunpack.c.l.b16 %v379
        %v604 = vunpack.c.l.b16 %v380
        %v605 = vunpack.c.l.b16 %v381
        %v606 = vunpack.c.l.b16 %v382
        %v607 = vunpack.c.l.b16 %v383
        %v608 = vunpack.c.l.b16 %v384
        %v609 = vunpack.c.l.b16 %v385
        %v610 = vunpack.c.l.b16 %v386
        %v611 = vunpack.c.l.b16 %v387
        %v612 = vunpack.c.l.b16 %v388
        %v613 = vunpack.c.l.b16 %v389
        %v614 = vunpack.c.l.b16 %v390
        %v615 = vunpack.c.l.b16 %v391
        %v616 = vunpack.c.l.b16 %v392
        %v617 = vunpack.c.l.b16 %v393
        %v618 = vunpack.c.l.b16 %v394
        %v619 = vunpack.c.l.b16 %v395
        %v620 = vunpack.c.l.b16 %v396
        %v621 = vunpack.c.l.b16 %v397
        %v622 = vunpack.c.l.b16 %v398
        %v623 = vunpack.c.l.b16 %v399
        %v624 = vunpack.c.l.b16 %v400
        %v625 = vunpack.c.l.b16 %v401
        %v626 = vunpack.c.l.b16 %v402
        %v627 = vunpack.c.l.b16 %v403
        %v628 = vunpack.c.l.b16 %v404
        %v629 = vunpack.c.l.b16 %v405
        %v630 = vunpack.c.l.b16 %v406
        %v631 = vunpack.c.l.b16 %v407
        %v632 = vunpack.c.l.b16 %v408
        %v633 = vunpack.c.l.b16 %v409
        %v634 = vunpack.c.l.b16 %v410
        %v635 = vunpack.c.l.b16 %v411
        %v636 = vunpack.c.l.b16 %v412
        %v637 = vunpack.c.l.b16 %v413
        %v638 = vunpack.c.l.b16 %v414
        %v639 = vunpack.c.l.b16 %v415
        %v640 = vunpack.c.l.b16 %v416
        %v641 = vunpack.c.l.b16 %v417
        %v642 = vunpack.c.l.b16 %v418
        %v643 = vunpack.c.l.b16 %v419
        %v644 = vunpack.c.l.b16 %v420
        %v645 = vunpack.c.l.b16 %v421
        %v646 = vunpack.c.l.b16 %v422
        %v647 = vunpack.c.l.b16 %v423
        %v648 = vunpack.c.l.b16 %v424
        %v649 = vunpack.c.l.b16 %v425
        %v650 = vunpack.c.l.b16 %v426
        %v651 = vunpack.c.l.b16 %v427
        %v652 = vunpack.c.l.b16 %v428
        %v653 = vunpack.c.l.b16 %v429
        %v654 = vunpack.c.l.b16 %v430
        %v655 = vunpack.c.l.b16 %v431
        %v656 = vunpack.c.l.b16 %v432
        %v657 = vunpack.c.l.b16 %v433
        %v658 = vunpack.c.l.b16 %v434
        %v659 = vunpack.c.l.b16 %v435
        %v660 = vunpack.c.l.b16 %v436
        %v661 = vunpack.c.l.b16 %v437
        %v662 = vunpack.c.l.b16 %v438
        %v663 = vunpack.c.l.b16 %v439
        %v664 = vunpack.c.l.b16 %v440
        %v665 = vunpack.c.l.b16 %v441
        %v666 = vunpack.c.l.b16 %v442
        %v667 = vunpack.c.l.b16 %v443
        %v668 = vunpack.c.l.b16 %v444
        %v669 = vunpack.c.l.b16 %v445
        %v670 = vunpack.c.l.b16 %v446
        %v671 = vunpack.c.l.b16 %v447
        %v672 = vunpack.c.l.b16 %v448
        %v673 = vunpack.c.l.b16 %v449
        %v674 = vpack.c.b16 %v577, %v576
        %v675 = vpack.c.b16 %v579, %v578
        %v676 = vpack.c.b16 %v581, %v580
        %v677 = vpack.c.b16 %v583, %v582
        %v678 = vpack.c.b16 %v585, %v584
        %v679 = vpack.c.b16 %v587, %v586
        %v680 = vpack.c.b16 %v589, %v588
        %v681 = vpack.c.b16 %v591, %v590
        %v682 = vpack.c.b16 %v593, %v592
        %v683 = vpack.c.b16 %v595, %v594
        %v684 = vpack.c.b16 %v597, %v596
        %v685 = vpack.c.b16 %v599, %v598
        %v686 = vpack.c.b16 %v601, %v600
        %v687 = vpack.c.b16 %v603, %v602
        %v688 = vpack.c.b16 %v605, %v604
        %v689 = vpack.c.b16 %v607, %v606
        %v690 = vpack.c.b16 %v609, %v608
        %v691 = vpack.c.b16 %v611, %v610
        %v692 = vpack.c.b16 %v613, %v612
        %v693 = vpack.c.b16 %v615, %v614
        %v694 = vpack.c.b16 %v617, %v616
        %v695 = vpack.c.b16 %v619, %v618
        %v696 = vpack.c.b16 %v621, %v620
        %v697 = vpack.c.b16 %v623, %v622
        %v698 = vpack.c.b16 %v625, %v624
        %v699 = vpack.c.b16 %v627, %v626
        %v700 = vpack.c.b16 %v629, %v628
        %v701 = vpack.c.b16 %v631, %v630
        %v702 = vpack.c.b16 %v633, %v632
        %v703 = vpack.c.b16 %v635, %v634
        %v704 = vpack.c.b16 %v637, %v636
        %v705 = vpack.c.b16 %v639, %v638
        %v706 = vpack.c.b16 %v641, %v640
        %v707 = vpack.c.b16 %v643, %v642
        %v708 = vpack.c.b16 %v645, %v644
        %v709 = vpack.c.b16 %v647, %v646
        %v710 = vpack.c.b16 %v649, %v648
        %v711 = vpack.c.b16 %v651, %v650
        %v712 = vpack.c.b16 %v653, %v652
        %v713 = vpack.c.b16 %v655, %v654
        %v714 = vpack.c.b16 %v657, %v656
        %v715 = vpack.c.b16 %v659, %v658
        %v716 = vpack.c.b16 %v661, %v660
        %v717 = vpack.c.b16 %v663, %v662
        %v718 = vpack.c.b16 %v665, %v664
        %v719 = vpack.c.b16 %v667, %v666
        %v720 = vpack.c.b16 %v669, %v668
        %v721 = vpack.c.b16 %v671, %v670
        %v722 = vpack.c.b16 %v673, %v672
        %vm772 = vcmask 130048
        %v774 = vsel %vm772, %v471, 0
        %776 = vmatpush.bf16.msra.mxu0 %v681
        %777 = vmatpush.bf16.msra.mxu0 %v680
        %778 = vmatpush.bf16.msra.mxu0 %v679
        %779 = vmatpush.bf16.msra.mxu0 %v678
        %780 = vmatpush.bf16.msra.mxu0 %v677
        %781 = vmatpush.bf16.msra.mxu0 %v676
        %782 = vmatpush.bf16.msra.mxu0 %v675
        %783 = vmatpush.bf16.msra.mxu0 %v674
        %784 = vmatmul.bf16.gmra.mxu0 %v465
        %v785 = vpop.f32.mrf.mxu0
        %v786 = vadd.f32 %v452, %v785
        %v787 = vpop.f32.mrf.mxu0
        %788 = vdwg.mxu0
        %789 = vmatpush.bf16.msra.mxu0 %v689
        %790 = vmatpush.bf16.msra.mxu0 %v688
        %791 = vmatpush.bf16.msra.mxu0 %v687
        %792 = vmatpush.bf16.msra.mxu0 %v686
        %793 = vmatpush.bf16.msra.mxu0 %v685
        %794 = vmatpush.bf16.msra.mxu0 %v684
        %795 = vmatpush.bf16.msra.mxu0 %v683
        %796 = vmatpush.bf16.msra.mxu0 %v682
        %797 = vmatmul.bf16.gmra.mxu0 %v466
        %v798 = vpop.f32.mrf.mxu0
        %v799 = vadd.f32 %v786, %v798
        %v800 = vpop.f32.mrf.mxu0
        %801 = vdwg.mxu0
        %802 = vmatpush.bf16.msra.mxu0 %v697
        %803 = vmatpush.bf16.msra.mxu0 %v696
        %804 = vmatpush.bf16.msra.mxu0 %v695
        %805 = vmatpush.bf16.msra.mxu0 %v694
        %806 = vmatpush.bf16.msra.mxu0 %v693
        %807 = vmatpush.bf16.msra.mxu0 %v692
        %808 = vmatpush.bf16.msra.mxu0 %v691
        %809 = vmatpush.bf16.msra.mxu0 %v690
        %810 = vmatmul.bf16.gmra.mxu0 %v467
        %v811 = vpop.f32.mrf.mxu0
        %v812 = vadd.f32 %v799, %v811
        %v813 = vpop.f32.mrf.mxu0
        %814 = vdwg.mxu0
        %815 = vmatpush.bf16.msra.mxu0 %v705
        %816 = vmatpush.bf16.msra.mxu0 %v704
        %817 = vmatpush.bf16.msra.mxu0 %v703
        %818 = vmatpush.bf16.msra.mxu0 %v702
        %819 = vmatpush.bf16.msra.mxu0 %v701
        %820 = vmatpush.bf16.msra.mxu0 %v700
        %821 = vmatpush.bf16.msra.mxu0 %v699
        %822 = vmatpush.bf16.msra.mxu0 %v698
        %823 = vmatmul.bf16.gmra.mxu0 %v468
        %v824 = vpop.f32.mrf.mxu0
        %v825 = vadd.f32 %v812, %v824
        %v826 = vpop.f32.mrf.mxu0
        %827 = vdwg.mxu0
        %828 = vmatpush.bf16.msra.mxu0 %v713
        %829 = vmatpush.bf16.msra.mxu0 %v712
        %830 = vmatpush.bf16.msra.mxu0 %v711
        %831 = vmatpush.bf16.msra.mxu0 %v710
        %832 = vmatpush.bf16.msra.mxu0 %v709
        %833 = vmatpush.bf16.msra.mxu0 %v708
        %834 = vmatpush.bf16.msra.mxu0 %v707
        %835 = vmatpush.bf16.msra.mxu0 %v706
        %836 = vmatmul.bf16.gmra.mxu0 %v469
        %v837 = vpop.f32.mrf.mxu0
        %v838 = vadd.f32 %v825, %v837
        %v839 = vpop.f32.mrf.mxu0
        %840 = vdwg.mxu0
        %841 = vmatpush.bf16.msra.mxu0 %v721
        %842 = vmatpush.bf16.msra.mxu0 %v720
        %843 = vmatpush.bf16.msra.mxu0 %v719
        %844 = vmatpush.bf16.msra.mxu0 %v718
        %845 = vmatpush.bf16.msra.mxu0 %v717
        %846 = vmatpush.bf16.msra.mxu0 %v716
        %847 = vmatpush.bf16.msra.mxu0 %v715
        %848 = vmatpush.bf16.msra.mxu0 %v714
        %849 = vmatmul.bf16.gmra.mxu0 %v470
        %v850 = vpop.f32.mrf.mxu0
        %v851 = vadd.f32 %v838, %v850
        %v852 = vpop.f32.mrf.mxu0
        %853 = vdwg.mxu0
        %854 = vmatpush.bf16.msra.mxu0 0
        %855 = vmatpush.bf16.msra.mxu0 0
        %856 = vmatpush.bf16.msra.mxu0 0
        %857 = vmatpush.bf16.msra.mxu0 0
        %858 = vmatpush.bf16.msra.mxu0 0
        %859 = vmatpush.bf16.msra.mxu0 0
        %860 = vmatpush.bf16.msra.mxu0 0
        %861 = vmatpush.bf16.msra.mxu0 %v722
        %862 = vmatmul.bf16.gmra.mxu0 %v774
        %v863 = vpop.f32.mrf.mxu0
        %v864 = vadd.f32 %v851, %v863
        %v865 = vpop.f32.mrf.mxu0
        %866 = vdwg.mxu0
        %v867 = vmax.f32 %v864, 0.0
        %868 = vst [vmem:[#allocation2] sm:$0xff] %v867
        %v869 = vld [vmem:[#allocation2] sm:$0xff]
        %v870 = vpack.c.bf16 %v869, %v869
        %v871 = vld [vmem:[#allocation9] sm:$0xf]
        %v872 = vld [vmem:[#allocation9 + $0x4] sm:$0xf]
        %v873 = vld [vmem:[#allocation9 + $0x8] sm:$0xf]
        %v874 = vld [vmem:[#allocation9 + $0xc] sm:$0xf]
        %v875 = vld [vmem:[#allocation9 + $0x10] sm:$0xf]
        %v876 = vld [vmem:[#allocation9 + $0x14] sm:$0xf]
        %v877 = vld [vmem:[#allocation9 + $0x18] sm:$0xf]
        %v878 = vld [vmem:[#allocation9 + $0x1c] sm:$0xf]
        %v879 = vld [vmem:[#allocation9 + $0x20] sm:$0xf]
        %v880 = vld [vmem:[#allocation9 + $0x24] sm:$0xf]
        %v881 = vld [vmem:[#allocation9 + $0x28] sm:$0xf]
        %v882 = vld [vmem:[#allocation9 + $0x2c] sm:$0xf]
        %v883 = vld [vmem:[#allocation9 + $0x30] sm:$0xf]
        %v884 = vld [vmem:[#allocation9 + $0x34] sm:$0xf]
        %v885 = vld [vmem:[#allocation9 + $0x38] sm:$0xf]
        %v886 = vld [vmem:[#allocation9 + $0x3c] sm:$0xf]
        %v887 = vld [vmem:[%s4] sm:$0x1]
        %v889 = vperm.slane %v887, 0
        %v907 = vunpack.c.l.b16 %v871
        %v908 = vunpack.c.l.b16 %v872
        %v909 = vunpack.c.l.b16 %v873
        %v910 = vunpack.c.l.b16 %v874
        %v911 = vunpack.c.l.b16 %v875
        %v912 = vunpack.c.l.b16 %v876
        %v913 = vunpack.c.l.b16 %v877
        %v914 = vunpack.c.l.b16 %v878
        %v915 = vunpack.c.l.b16 %v879
        %v916 = vunpack.c.l.b16 %v880
        %v917 = vunpack.c.l.b16 %v881
        %v918 = vunpack.c.l.b16 %v882
        %v919 = vunpack.c.l.b16 %v883
        %v920 = vunpack.c.l.b16 %v884
        %v921 = vunpack.c.l.b16 %v885
        %v922 = vunpack.c.l.b16 %v886
        %v923 = vpack.c.b16 %v908, %v907
        %v924 = vpack.c.b16 %v910, %v909
        %v925 = vpack.c.b16 %v912, %v911
        %v926 = vpack.c.b16 %v914, %v913
        %v927 = vpack.c.b16 %v916, %v915
        %v928 = vpack.c.b16 %v918, %v917
        %v929 = vpack.c.b16 %v920, %v919
        %v930 = vpack.c.b16 %v922, %v921
        %939 = vmatpush.bf16.msra.mxu0 %v930
        %940 = vmatpush.bf16.msra.mxu0 %v929
        %941 = vmatpush.bf16.msra.mxu0 %v928
        %942 = vmatpush.bf16.msra.mxu0 %v927
        %943 = vmatpush.bf16.msra.mxu0 %v926
        %944 = vmatpush.bf16.msra.mxu0 %v925
        %945 = vmatpush.bf16.msra.mxu0 %v924
        %946 = vmatpush.bf16.msra.mxu0 %v923
        %947 = vmatmul.bf16.gmra.mxu0 %v870
        %v948 = vpop.f32.mrf.mxu0
        %v949 = vadd.f32 %v889, %v948
        %v950 = vpop.f32.mrf.mxu0
        %951 = vdwg.mxu0
        %v952 = vmax.f32 %v949, 0.0
        %953 = vst [vmem:[#allocation3] sm:$0xff] %v952
        %v954 = vld [vmem:[#allocation3] sm:$0xff]
        %v955 = vpack.c.bf16 %v954, %v954
        %v956 = vld [vmem:[#allocation10] sm:$0xf]
        %v957 = vld [vmem:[#allocation10 + $0x4] sm:$0xf]
        %v958 = vld [vmem:[#allocation10 + $0x8] sm:$0xf]
        %v959 = vld [vmem:[#allocation10 + $0xc] sm:$0xf]
        %v960 = vld [vmem:[#allocation10 + $0x10] sm:$0xf]
        %v961 = vld [vmem:[#allocation10 + $0x14] sm:$0xf]
        %v962 = vld [vmem:[#allocation10 + $0x18] sm:$0xf]
        %v963 = vld [vmem:[#allocation10 + $0x1c] sm:$0xf]
        %v964 = vld [vmem:[#allocation10 + $0x20] sm:$0xf]
        %v965 = vld [vmem:[#allocation10 + $0x24] sm:$0xf]
        %v966 = vld [vmem:[#allocation10 + $0x28] sm:$0xf]
        %v967 = vld [vmem:[#allocation10 + $0x2c] sm:$0xf]
        %v968 = vld [vmem:[#allocation10 + $0x30] sm:$0xf]
        %v969 = vld [vmem:[#allocation10 + $0x34] sm:$0xf]
        %v970 = vld [vmem:[#allocation10 + $0x38] sm:$0xf]
        %v971 = vld [vmem:[#allocation10 + $0x3c] sm:$0xf]
        %v972 = vld [vmem:[%s6] sm:$0x1]
        %v974 = vperm.slane %v972, 0
        %v992 = vunpack.c.l.b16 %v956
        %v993 = vunpack.c.l.b16 %v957
        %v994 = vunpack.c.l.b16 %v958
        %v995 = vunpack.c.l.b16 %v959
        %v996 = vunpack.c.l.b16 %v960
        %v997 = vunpack.c.l.b16 %v961
        %v998 = vunpack.c.l.b16 %v962
        %v999 = vunpack.c.l.b16 %v963
        %v1000 = vunpack.c.l.b16 %v964
        %v1001 = vunpack.c.l.b16 %v965
        %v1002 = vunpack.c.l.b16 %v966
        %v1003 = vunpack.c.l.b16 %v967
        %v1004 = vunpack.c.l.b16 %v968
        %v1005 = vunpack.c.l.b16 %v969
        %v1006 = vunpack.c.l.b16 %v970
        %v1007 = vunpack.c.l.b16 %v971
        %v1008 = vpack.c.b16 %v993, %v992
        %v1009 = vpack.c.b16 %v995, %v994
        %v1010 = vpack.c.b16 %v997, %v996
        %v1011 = vpack.c.b16 %v999, %v998
        %v1012 = vpack.c.b16 %v1001, %v1000
        %v1013 = vpack.c.b16 %v1003, %v1002
        %v1014 = vpack.c.b16 %v1005, %v1004
        %v1015 = vpack.c.b16 %v1007, %v1006
        %1024 = vmatpush.bf16.msra.mxu0 %v1015
        %1025 = vmatpush.bf16.msra.mxu0 %v1014
        %1026 = vmatpush.bf16.msra.mxu0 %v1013
        %1027 = vmatpush.bf16.msra.mxu0 %v1012
        %1028 = vmatpush.bf16.msra.mxu0 %v1011
        %1029 = vmatpush.bf16.msra.mxu0 %v1010
        %1030 = vmatpush.bf16.msra.mxu0 %v1009
        %1031 = vmatpush.bf16.msra.mxu0 %v1008
        %1032 = vmatmul.bf16.gmra.mxu0 %v955
        %v1033 = vpop.f32.mrf.mxu0
        %v1034 = vadd.f32 %v974, %v1033
        %v1035 = vpop.f32.mrf.mxu0
        %1036 = vdwg.mxu0
        %v1037 = vmax.f32 %v1034, 0.0
        %1038 = vst [vmem:[%s346] sm:$0xff] %v1037
        %s1039 = sand.u32 %s186, 1
        %s1040 = scalar_lea.sflag [#allocation6], %s1039
        %s1041 = sand.u32 %s186, 1
        %s1042 = smul.addr %s1041, 8
        %s1043 = scalar_lea.vmem [#allocation12], %s1042
        // Predicated region
        $region65: #{tpu_custom_call.1} parent=47 // pred_check
          %p1044 = pneg %p196
        $region66: #{tpu_custom_call.1} parent=47 // pred_check_branch
          %1046 = sbr.rel (%p1044) target = $region68
        $region67: #{tpu_custom_call.1} parent=47 // pred_region
          %1048 = vsyncadd %s1040, 0
          %s1049 = smul.addr %s26, 8
          %s1050 = scalar_lea.hbm %s7, %s1049
          %s1052 = sshll.u32 %s1043, 4
          %s1053 = int_to_ptr.vmem [resolvable:$true] %s1052
          %s1054 = sshll.u32 %s1050, 4
          %s1055 = int_to_ptr.hbm [resolvable:$true] %s1054
          %1057 = dma.vmem_to_hbm [thread:$0]  %s1053, 128, %s1055, %s1040
        $region68: #{tpu_custom_call.1} parent=47 // pred_fallthru
          _
      $region48: #{tpu_custom_call.1} parent=5 // pred_fallthru
        _
      %p1058 = scmp.le.s32.totalorder 2, %s21
      // Predicated region
      $region69: #{tpu_custom_call.1} parent=5 // pred_check
        %p1059 = pneg %p1058
      $region70: #{tpu_custom_call.1} parent=5 // pred_check_branch
        %1061 = sbr.rel (%p1059) target = $region72
      $region71: #{tpu_custom_call.1} parent=5 // pred_region
        %s1062 = ssub.s32 %s21, 2
        // Predicated region
        $region73: #{tpu_custom_call.1} parent=71 // pred_check
          %p1063 = pneg %p202
        $region74: #{tpu_custom_call.1} parent=71 // pred_check_branch
          %1065 = sbr.rel (%p1063) target = $region76
        $region75: #{tpu_custom_call.1} parent=71 // pred_region
          %s1066 = sand.u32 %s187, 1
          %s1067 = scalar_lea.sflag [#allocation6], %s1066
          %s1068 = sand.u32 %s187, 1
          %s1069 = smul.addr %s1068, 8
          %s1070 = scalar_lea.vmem [#allocation12], %s1069
          %1072 = dma.done %s1067, 128
        $region76: #{tpu_custom_call.1} parent=71 // pred_fallthru
          _
      $region72: #{tpu_custom_call.1} parent=5 // pred_fallthru
        _
    $region6: #{tpu_custom_call.1} parent=1 // loop_footer
      %s25 = sadd.s32 1, %s21
    $region7: #{tpu_custom_call.1} parent=1 // loop_footer_branch
      %20 = sbr.rel target = $region3
    $region8: #{tpu_custom_call.1} parent=1 // loop_exit
      _
    %1073 = vsyncpa [#allocation5], 1
    %s1074 = scalar_lea.sflag [#allocation5], 1
    %1075 = vsyncpa %s1074, 1
    %1076 = vsyncpa [#allocation8], 1
    %1077 = vsyncpa [#allocation11], 1
    %1078 = vsyncpa [#allocation6], 1
    %s1079 = scalar_lea.sflag [#allocation6], 1
    %1080 = vsyncpa %s1079, 1

</llo_original>
